<compile_context>
chip_gen: v7x
topology: tpu7x:2x2x1
jax: 0.10.0
libtpu: 0.0.40
codegen_flags: <defaults>
</compile_context>

<pallas_src>
import jax
import jax.numpy as jnp
from jax import lax
from jax.experimental import pallas as pl


# --------------- feature network: 3x3 SAME conv + ReLU ----------------------

def _conv_kernel(ct_ref, w_ref, b_ref, o_ref):
    # ct_ref: (Cin*9, N*H*W) im2col (lane-dense columns)
    # w_ref : (Cout, Cin*9), b_ref: (Cout, 1), o_ref: (Cout, N*H*W)
    acc = jnp.dot(w_ref[...], ct_ref[...], preferred_element_type=jnp.float32)
    o_ref[...] = jnp.maximum(acc + b_ref[...], 0.0)


def feature_network(x, w_conv, b_conv):
    N, C, H, W = x.shape
    Cout = w_conv.shape[0]
    kh = kw = 3
    xp = jnp.pad(x, ((0, 0), (0, 0), (1, 1), (1, 1)))
    # TODO(synk): the 9-tap im2col gather stays in the XLA wrapper; folding it
    # into the kernel needs lane/sublane-crossing reshapes that Mosaic does not
    # handle well at this (C=4, W=16) geometry.
    taps = jnp.stack(
        [xp[:, :, i:i + H, j:j + W] for i in range(kh) for j in range(kw)],
        axis=2)                                            # (N, C, 9, H, W)
    # columns ordered (n, h, w); rows ordered (c, kh, kw) to match OIHW weights
    cols_t = taps.transpose(1, 2, 0, 3, 4).reshape(C * kh * kw, N * H * W)
    w_mat = w_conv.reshape(Cout, C * kh * kw)              # (Cout, C*9)
    b_col = b_conv.reshape(Cout, 1)

    # single block, no grid: whole problem (~80 KiB) lives in VMEM at once
    out_t = pl.pallas_call(
        _conv_kernel,
        out_shape=jax.ShapeDtypeStruct((Cout, N * H * W), jnp.float32),
    )(cols_t, w_mat, b_col)

    # one small (16 KiB) layout fix back to NCHW for the returned feature map
    return out_t.reshape(Cout, N, H, W).transpose(1, 0, 2, 3)


# --------------- fused aggregator + losses (single Pallas call) -------------

def _head_kernel(m3_ref, mf_ref, wa_ref, ba_ref, wp_ref,
                 y_ref, jsd_ref, prior_ref):
    # aggregator: global average pool + linear
    pooled = jnp.mean(m3_ref[...], axis=-1)                       # (N, C)
    y = jnp.dot(pooled, wa_ref[...],
                preferred_element_type=jnp.float32) + ba_ref[...]  # (N, D)
    y_ref[...] = y

    # global-DIM JSD score loss: project flattened M and score against Y
    proj = jnp.dot(mf_ref[...], wp_ref[...],
                   preferred_element_type=jnp.float32)             # (N, D)
    scores = lax.dot_general(                                      # (N, N)
        proj, y, dimension_numbers=(((1,), (1,)), ((), ())),
        preferred_element_type=jnp.float32)
    n = scores.shape[0]
    r = lax.broadcasted_iota(jnp.int32, (n, n), 0)
    c = lax.broadcasted_iota(jnp.int32, (n, n), 1)
    diag = (r == c).astype(jnp.float32)

    def softplus(z):
        return jnp.maximum(z, 0.0) + jnp.log1p(jnp.exp(-jnp.abs(z)))

    e_pos = jnp.sum(softplus(-scores) * diag, keepdims=True) / n
    e_neg = jnp.sum(softplus(scores) * (1.0 - diag),
                    keepdims=True) / (n * (n - 1))
    jsd_ref[...] = e_pos + e_neg                                   # (1, 1)

    # TODO(synk): real DIM prior loss uses a learned discriminator; this is a
    # deterministic L2-on-Y surrogate.
    prior_ref[...] = jnp.mean(y * y, keepdims=True)                # (1, 1)


def aggregator_and_losses(M, w_agg, b_agg, w_proj):
    N, C, H, W = M.shape
    assert N >= 2, "global DIM JSD loss requires batch size >= 2"
    D = w_agg.shape[1]
    m3 = M.reshape(N, C, H * W)        # view used for pooling
    mf = M.reshape(N, C * H * W)       # view used for the projection matmul
    y, jsd, prior = pl.pallas_call(
        _head_kernel,
        out_shape=(
            jax.ShapeDtypeStruct((N, D), jnp.float32),
            jax.ShapeDtypeStruct((1, 1), jnp.float32),
            jax.ShapeDtypeStruct((1, 1), jnp.float32),
        ),
    )(m3, mf, w_agg, b_agg.reshape(1, D), w_proj)
    return y, jsd[0, 0], prior[0, 0]


# --------------- InfoMax forward (mirrors the torch wrapper) ----------------

def infomax_forward(batch, params, w_proj):
    M = feature_network(batch, params["w_conv"], params["b_conv"])
    # aggregator + both losses are fused into a single Pallas call; the
    # per-loss dicts are still merged exactly like the torch module's loop.
    Y, jsd, prior = aggregator_and_losses(
        M, params["w_agg"], params["b_agg"], w_proj)
    loss_dicts = {
        "global": {"loss": jsd, "global_jsd": jsd},
        "prior": {"loss": prior, "prior": prior},
    }
    result = dict()
    for l in loss_dicts.values():
        for k, v in l.items():
            if k in result:
                result[k] = result[k] + v
            else:
                result[k] = v
    return (result, M, Y)


if __name__ == "__main__":
    N, Cin, H, W = 2, 4, 16, 16
    Cfeat, D = 8, 16

    key = jax.random.PRNGKey(0)
    k_x, k_wc, k_bc, k_wa, k_ba, k_wp = jax.random.split(key, 6)

    x = jax.random.normal(k_x, (N, Cin, H, W), dtype=jnp.float32)
    params = {
        "w_conv": 0.1 * jax.random.normal(k_wc, (Cfeat, Cin, 3, 3), jnp.float32),
        "b_conv": 0.1 * jax.random.normal(k_bc, (Cfeat,), jnp.float32),
        "w_agg": 0.1 * jax.random.normal(k_wa, (Cfeat, D), jnp.float32),
        "b_agg": 0.1 * jax.random.normal(k_ba, (D,), jnp.float32),
    }
    w_proj = 0.05 * jax.random.normal(k_wp, (Cfeat * H * W, D), jnp.float32)

    result, M, Y = infomax_forward(x, params, w_proj)
    jax.block_until_ready((result, M, Y))

    # ---- pure-JAX reference checks ----
    ref_M = lax.conv_general_dilated(
        x, params["w_conv"], window_strides=(1, 1), padding="SAME",
        dimension_numbers=("NCHW", "OIHW", "NCHW"))
    ref_M = jnp.maximum(ref_M + params["b_conv"].reshape(1, -1, 1, 1), 0.0)
    assert M.shape == (N, Cfeat, H, W) and Y.shape == (N, D)
    assert jnp.allclose(M, ref_M, atol=1e-3, rtol=1e-3)

    pooled_ref = ref_M.mean(axis=(2, 3))
    Y_ref = pooled_ref @ params["w_agg"] + params["b_agg"]
    scores_ref = (ref_M.reshape(N, -1) @ w_proj) @ Y_ref.T
    sp = lambda z: jnp.maximum(z, 0.0) + jnp.log1p(jnp.exp(-jnp.abs(z)))
    eye = jnp.eye(N, dtype=jnp.float32)
    jsd_ref = (jnp.sum(sp(-scores_ref) * eye) / N
               + jnp.sum(sp(scores_ref) * (1.0 - eye)) / (N * (N - 1)))
    prior_ref = jnp.mean(Y_ref * Y_ref)

    assert jnp.allclose(Y, Y_ref, atol=1e-3, rtol=1e-3)
    assert jnp.allclose(result["global_jsd"], jsd_ref, atol=1e-3, rtol=1e-3)
    assert jnp.allclose(result["prior"], prior_ref, atol=1e-3, rtol=1e-3)
    assert jnp.allclose(result["loss"], jsd_ref + prior_ref, atol=1e-3, rtol=1e-3)
    assert all(bool(jnp.isfinite(v)) for v in jax.tree_util.tree_leaves(result))

    print("KERNEL_OK")
</pallas_src>

<mosaic_0001>
module attributes {stable_mosaic.version = 11 : i64} {
  func.func @_conv_kernel(%arg0: memref<36x512xf32, #tpu.memory_space<vmem>>, %arg1: memref<8x36xf32, #tpu.memory_space<vmem>>, %arg2: memref<8x1xf32, #tpu.memory_space<vmem>>, %arg3: memref<8x512xf32, #tpu.memory_space<vmem>>) attributes {dimension_semantics = [], scalar_prefetch = 0 : i64, scratch_operands = 0 : i64, tpu.core_type = #tpu.core_type<tc>} {
    %c0 = arith.constant 0 : index
    %c0_0 = arith.constant 0 : index
    %0 = vector.load %arg1[%c0, %c0_0] : memref<8x36xf32, #tpu.memory_space<vmem>>, vector<8x36xf32>
    %c0_1 = arith.constant 0 : index
    %c0_2 = arith.constant 0 : index
    %1 = vector.load %arg0[%c0_1, %c0_2] : memref<36x512xf32, #tpu.memory_space<vmem>>, vector<36x512xf32>
    %cst = arith.constant dense<0.000000e+00> : vector<8x512xf32>
    %2 = tpu.matmul %0, %1, %cst {dimension_numbers = #tpu.dot_dimension_numbers<[1], [0], [0], [1], [0, 0, 1, 1], [], []>} : vector<8x36xf32>, vector<36x512xf32>, vector<8x512xf32> -> vector<8x512xf32>
    %c0_3 = arith.constant 0 : index
    %c0_4 = arith.constant 0 : index
    %3 = vector.load %arg2[%c0_3, %c0_4] : memref<8x1xf32, #tpu.memory_space<vmem>>, vector<8x1xf32>
    %4 = vector.broadcast %3 : vector<8x1xf32> to vector<8x512xf32>
    %5 = arith.addf %2, %4 : vector<8x512xf32>
    %cst_5 = arith.constant 0.000000e+00 : f32
    %6 = vector.broadcast %cst_5 : f32 to vector<8x512xf32>
    %7 = arith.maximumf %5, %6 : vector<8x512xf32>
    %c0_6 = arith.constant 0 : index
    %c0_7 = arith.constant 0 : index
    %8 = vector.load %arg3[%c0_6, %c0_7] : memref<8x512xf32, #tpu.memory_space<vmem>>, vector<8x512xf32>
    tpu.vector_store %arg3[%c0_6, %c0_7], %7 {strides = array<i32>} : memref<8x512xf32, #tpu.memory_space<vmem>>, vector<8x512xf32>,
    return
  }
}

</mosaic_0001>

<llo_original>
// kernel: tpu_custom_call.1
$region0: #{tpu_custom_call.1}
  #allocation0 [shape = 'u32[]', space=smem, size = 0x4, offset = 0x4, fixed_abs, tag = 'smem constant byte address 0x4 - core index']
  #allocation1 [shape = 'u32[144,128]{1,0:T(1,128)}', space=vmem, size = 0x12000, scoped, tag = 'internal scratch']
  %s0 = inlined_call_operand.hbm [shape: f32[36,512], index: 0, kind: input, shape index: {}]
  %s1 = inlined_call_operand.vmem [shape: f32[8,36], index: 1, kind: input, shape index: {}]
  %s2 = inlined_call_operand.vmem [shape: f32[8,1], index: 2, kind: input, shape index: {}]
  %s3 = inlined_call_operand.hbm [shape: f32[8,512], index: 3, kind: output, shape index: {}]
  %s4 = sld [smem:[#allocation0]]
  $region26: #{tpu_custom_call.1} parent=0
    _
  %s6 = ssub.s32 1, %s4
  %s7 = scalar_select 0, %s6, %s4
  $region1: #{tpu_custom_call.1} parent=0
    #allocation2 [shape = 'u8[81920]{0}', space=vmem, size = 0x14000, scoped, tag = 'input window, operand 0, single buffered']
    #allocation3 [shape = 's32[1]{0}', space=sflag, size = 0x4, scoped, tag = 'scoped memory for tpu_custom_call.1']
    #allocation4 [shape = 's32[1]{0}', space=sflag, size = 0x4, scoped, tag = 'scoped memory for tpu_custom_call.1']
    #allocation5 [shape = 'u8[16384]{0}', space=vmem, size = 0x4000, scoped, tag = 'output window, operand 0, single buffered']
    %8 = vsyncpa [#allocation3], 0
    %9 = vsyncpa [#allocation4], 0
    // Predicated region
    $region2: #{tpu_custom_call.1} parent=1 // pred_check
      _
    $region3: #{tpu_custom_call.1} parent=1 // pred_check_branch
      %11 = sbr.rel (0) target = $region5
    $region4: #{tpu_custom_call.1} parent=1 // pred_region
      %s13 = ssub.s32 2560, 2560
      %14 = vsyncadd [#allocation3], %s13
      %s15 = sshll.u32 [#allocation2], 4
      %s16 = int_to_ptr.vmem [resolvable:$true] %s15
      %21 = dma.hbm_to_vmem [thread:$0]  %s0, 2560, %s16, [#allocation3], 512, 512, 32
    $region5: #{tpu_custom_call.1} parent=1 // pred_fallthru
      _
    // Predicated region
    $region6: #{tpu_custom_call.1} parent=1 // pred_check
      _
    $region7: #{tpu_custom_call.1} parent=1 // pred_check_branch
      %23 = sbr.rel (0) target = $region9
    $region8: #{tpu_custom_call.1} parent=1 // pred_region
      _
    $region9: #{tpu_custom_call.1} parent=1 // pred_fallthru
      _
    // Predicated region
    $region10: #{tpu_custom_call.1} parent=1 // pred_check
      _
    $region11: #{tpu_custom_call.1} parent=1 // pred_check_branch
      %25 = sbr.rel (0) target = $region13
    $region12: #{tpu_custom_call.1} parent=1 // pred_region
      _
    $region13: #{tpu_custom_call.1} parent=1 // pred_fallthru
      _
    // Predicated region
    $region14: #{tpu_custom_call.1} parent=1 // pred_check
      _
    $region15: #{tpu_custom_call.1} parent=1 // pred_check_branch
      %27 = sbr.rel (0) target = $region17
    $region16: #{tpu_custom_call.1} parent=1 // pred_region
      %28 = dma.done [#allocation3], 2560
    $region17: #{tpu_custom_call.1} parent=1 // pred_fallthru
      _
    %v29 = vld [vmem:[%s1] sm:$0xff]
    %v30 = vld [vmem:[#allocation2] sm:$0xff]
    %v31 = vld [vmem:[#allocation2 + $0x8] sm:$0xff]
    %v32 = vld [vmem:[#allocation2 + $0x10] sm:$0xff]
    %v33 = vld [vmem:[#allocation2 + $0x18] sm:$0xff]
    %v34 = vld [vmem:[#allocation2 + $0x20] sm:$0xff]
    %v35 = vld [vmem:[#allocation2 + $0x28] sm:$0xff]
    %v36 = vld [vmem:[#allocation2 + $0x30] sm:$0xff]
    %v37 = vld [vmem:[#allocation2 + $0x38] sm:$0xff]
    %v38 = vld [vmem:[#allocation2 + $0x40] sm:$0xff]
    %v39 = vld [vmem:[#allocation2 + $0x48] sm:$0xff]
    %v40 = vld [vmem:[#allocation2 + $0x50] sm:$0xff]
    %v41 = vld [vmem:[#allocation2 + $0x58] sm:$0xff]
    %v42 = vld [vmem:[#allocation2 + $0x60] sm:$0xff]
    %v43 = vld [vmem:[#allocation2 + $0x68] sm:$0xff]
    %v44 = vld [vmem:[#allocation2 + $0x70] sm:$0xff]
    %v45 = vld [vmem:[#allocation2 + $0x78] sm:$0xff]
    %v46 = vld [vmem:[#allocation2 + $0x80] sm:$0xf]
    %v47 = vld [vmem:[#allocation2 + $0x88] sm:$0xf]
    %v48 = vld [vmem:[#allocation2 + $0x90] sm:$0xf]
    %v49 = vld [vmem:[#allocation2 + $0x98] sm:$0xf]
    %v50 = vld [vmem:[%s2] sm:$0xff]
    %52 = vset.pattern.permute.xlu0 0
    %53 = vperm.xlu0 %52, %v50
    %v54 = vpop.permute.xlu0 %53
    %vm56 = vcmask 293888
    %v58 = vsel %vm56, %v29, 0
    %vm60 = vcmask 1043456
    %v62 = vsel %vm60, %v46, 0
    %v65 = vsel %vm60, %v47, 0
    %v68 = vsel %vm60, %v48, 0
    %v71 = vsel %vm60, %v49, 0
    %73 = vmatprep.subr.mxu0 %v31
    %74 = vmatpush1.msra.mxu0 %v30
    %75 = vmatprep.subr.mxu0 %v35
    %76 = vmatpush1.msra.mxu0 %v34
    %77 = vmatprep.subr.mxu0 %v39
    %78 = vmatpush1.msra.mxu0 %v38
    %79 = vmatprep.subr.mxu0 %v43
    %80 = vmatpush1.msra.mxu0 %v42
    %81 = vmatprep.subr.mxu0 %v65
    %82 = vmatpush1.msra.mxu0 %v62
    %83 = vmatprep.subr.mxu0 0.0
    %84 = vmatpush1.msra.mxu0 0.0
    %85 = vmatprep.subr.mxu0 0.0
    %86 = vmatpush1.msra.mxu0 0.0
    %87 = vmatprep.subr.mxu0 0.0
    %88 = vmatpush1.msra.mxu0 0.0
    %89 = vmatprep.subr.mxu0 0.0
    %90 = vmatpush1.msra.mxu0 0.0
    %91 = vmatprep.subr.mxu0 0.0
    %92 = vmatpush1.msra.mxu0 0.0
    %93 = vmatprep.subr.mxu0 0.0
    %94 = vmatpush1.msra.mxu0 0.0
    %95 = vmatprep.subr.mxu0 0.0
    %96 = vmatpush1.msra.mxu0 0.0
    %97 = vmatprep.subr.mxu0 0.0
    %98 = vmatpush1.msra.mxu0 0.0
    %99 = vmatprep.subr.mxu0 0.0
    %100 = vmatpush1.msra.mxu0 0.0
    %101 = vmatprep.subr.mxu0 0.0
    %102 = vmatpush1.msra.mxu0 0.0
    %103 = vmatprep.subr.mxu0 0.0
    %104 = vmatpush1.msra.mxu0 0.0
    %105 = vmatprep.subr.mxu0 0.0
    %106 = vmatpush1.msra.mxu0 0.0
    %107 = vmatprep.subr.mxu0 0.0
    %108 = vmatpush1.msra.mxu0 0.0
    %109 = vmatprep.subr.mxu0 0.0
    %110 = vmatpush1.msra.mxu0 0.0
    %111 = vmatprep.subr.mxu0 0.0
    %112 = vmatpush1.msra.mxu0 0.0
    %113 = vmatprep.subr.mxu0 0.0
    %114 = vmatpush1.msra.mxu0 0.0
    %115 = vmatprep.subr.mxu0 0.0
    %116 = vmatpush1.msra.mxu0 0.0
    %117 = vmatprep.subr.mxu0 0.0
    %118 = vmatpush1.msra.mxu0 0.0
    %119 = vmatprep.subr.mxu0 0.0
    %120 = vmatpush1.msra.mxu0 0.0
    %121 = vmatprep.subr.mxu0 0.0
    %122 = vmatpush1.msra.mxu0 0.0
    %123 = vmatprep.subr.mxu0 0.0
    %124 = vmatpush1.msra.mxu0 0.0
    %125 = vmatprep.subr.mxu0 0.0
    %126 = vmatpush1.msra.mxu0 0.0
    %127 = vmatprep.subr.mxu0 0.0
    %128 = vmatpush1.msra.mxu0 0.0
    %129 = vmatprep.subr.mxu0 0.0
    %130 = vmatpush1.msra.mxu0 0.0
    %131 = vmatprep.subr.mxu0 0.0
    %132 = vmatpush1.msra.mxu0 0.0
    %133 = vmatprep.subr.mxu0 0.0
    %134 = vmatpush1.msra.mxu0 0.0
    %135 = vmatprep.subr.mxu0 0.0
    %136 = vmatpush1.msra.mxu0 0.0
    %137 = vmatprep.mubr.f32.mxu0 0.0
    %138 = vmatmul.mubr.f32.gmra.mrb[0].mxu0 %v58
    %v139 = vpop.f32.mrb[0].mxu0
    %v140 = vadd.f32 %v54, %v139
    %v141 = vpop.f32.mrb[0].mxu0
    %v142 = vadd.f32 %v54, %v141
    %143 = vdwg.mxu0
    %144 = vmatprep.subr.mxu0 %v33
    %145 = vmatpush1.msra.mxu0 %v32
    %146 = vmatprep.subr.mxu0 %v37
    %147 = vmatpush1.msra.mxu0 %v36
    %148 = vmatprep.subr.mxu0 %v41
    %149 = vmatpush1.msra.mxu0 %v40
    %150 = vmatprep.subr.mxu0 %v45
    %151 = vmatpush1.msra.mxu0 %v44
    %152 = vmatprep.subr.mxu0 %v71
    %153 = vmatpush1.msra.mxu0 %v68
    %154 = vmatprep.subr.mxu0 0.0
    %155 = vmatpush1.msra.mxu0 0.0
    %156 = vmatprep.subr.mxu0 0.0
    %157 = vmatpush1.msra.mxu0 0.0
    %158 = vmatprep.subr.mxu0 0.0
    %159 = vmatpush1.msra.mxu0 0.0
    %160 = vmatprep.subr.mxu0 0.0
    %161 = vmatpush1.msra.mxu0 0.0
    %162 = vmatprep.subr.mxu0 0.0
    %163 = vmatpush1.msra.mxu0 0.0
    %164 = vmatprep.subr.mxu0 0.0
    %165 = vmatpush1.msra.mxu0 0.0
    %166 = vmatprep.subr.mxu0 0.0
    %167 = vmatpush1.msra.mxu0 0.0
    %168 = vmatprep.subr.mxu0 0.0
    %169 = vmatpush1.msra.mxu0 0.0
    %170 = vmatprep.subr.mxu0 0.0
    %171 = vmatpush1.msra.mxu0 0.0
    %172 = vmatprep.subr.mxu0 0.0
    %173 = vmatpush1.msra.mxu0 0.0
    %174 = vmatprep.subr.mxu0 0.0
    %175 = vmatpush1.msra.mxu0 0.0
    %176 = vmatprep.subr.mxu0 0.0
    %177 = vmatpush1.msra.mxu0 0.0
    %178 = vmatprep.subr.mxu0 0.0
    %179 = vmatpush1.msra.mxu0 0.0
    %180 = vmatprep.subr.mxu0 0.0
    %181 = vmatpush1.msra.mxu0 0.0
    %182 = vmatprep.subr.mxu0 0.0
    %183 = vmatpush1.msra.mxu0 0.0
    %184 = vmatprep.subr.mxu0 0.0
    %185 = vmatpush1.msra.mxu0 0.0
    %186 = vmatprep.subr.mxu0 0.0
    %187 = vmatpush1.msra.mxu0 0.0
    %188 = vmatprep.subr.mxu0 0.0
    %189 = vmatpush1.msra.mxu0 0.0
    %190 = vmatprep.subr.mxu0 0.0
    %191 = vmatpush1.msra.mxu0 0.0
    %192 = vmatprep.subr.mxu0 0.0
    %193 = vmatpush1.msra.mxu0 0.0
    %194 = vmatprep.subr.mxu0 0.0
    %195 = vmatpush1.msra.mxu0 0.0
    %196 = vmatprep.subr.mxu0 0.0
    %197 = vmatpush1.msra.mxu0 0.0
    %198 = vmatprep.subr.mxu0 0.0
    %199 = vmatpush1.msra.mxu0 0.0
    %200 = vmatprep.subr.mxu0 0.0
    %201 = vmatpush1.msra.mxu0 0.0
    %202 = vmatprep.subr.mxu0 0.0
    %203 = vmatpush1.msra.mxu0 0.0
    %204 = vmatprep.subr.mxu0 0.0
    %205 = vmatpush1.msra.mxu0 0.0
    %206 = vmatprep.subr.mxu0 0.0
    %207 = vmatpush1.msra.mxu0 0.0
    %208 = vmatprep.mubr.f32.mxu0 0.0
    %209 = vmatmul.mubr.f32.gmra.mrb[0].mxu0 %v58
    %v210 = vpop.f32.mrb[0].mxu0
    %v211 = vadd.f32 %v54, %v210
    %v212 = vpop.f32.mrb[0].mxu0
    %v213 = vadd.f32 %v54, %v212
    %214 = vdwg.mxu0
    %v215 = vmax.f32 %v140, 0.0
    %v216 = vmax.f32 %v142, 0.0
    %v217 = vmax.f32 %v211, 0.0
    %v218 = vmax.f32 %v213, 0.0
    %219 = vst [vmem:[#allocation5] sm:$0xff] %v215
    %220 = vst [vmem:[#allocation5 + $0x8] sm:$0xff] %v216
    %221 = vst [vmem:[#allocation5 + $0x10] sm:$0xff] %v217
    %222 = vst [vmem:[#allocation5 + $0x18] sm:$0xff] %v218
    // Predicated region
    $region18: #{tpu_custom_call.1} parent=1 // pred_check
      _
    $region19: #{tpu_custom_call.1} parent=1 // pred_check_branch
      %224 = sbr.rel (0) target = $region21
    $region20: #{tpu_custom_call.1} parent=1 // pred_region
      %s226 = ssub.s32 512, 512
      %227 = vsyncadd [#allocation4], %s226
      %s229 = sshll.u32 [#allocation5], 4
      %s230 = int_to_ptr.vmem [resolvable:$true] %s229
      %232 = dma.vmem_to_hbm [thread:$0]  %s230, 512, %s3, [#allocation4]
    $region21: #{tpu_custom_call.1} parent=1 // pred_fallthru
      _
    // Predicated region
    $region22: #{tpu_custom_call.1} parent=1 // pred_check
      _
    $region23: #{tpu_custom_call.1} parent=1 // pred_check_branch
      %234 = sbr.rel (0) target = $region25
    $region24: #{tpu_custom_call.1} parent=1 // pred_region
      %235 = dma.done [#allocation4], 512
    $region25: #{tpu_custom_call.1} parent=1 // pred_fallthru
      _
    %236 = vsyncpa [#allocation3], 1
    %237 = vsyncpa [#allocation4], 1

</llo_original>
